<compile_context>
chip_gen: v5e
topology: v5e:2x2
jax: 0.10.0
libtpu: 0.0.40
codegen_flags: <defaults>
</compile_context>

<pallas_src>
import functools

import numpy as np

import jax
import jax.numpy as jnp
from jax.experimental import pallas as pl
from jax.experimental.pallas import tpu as pltpu


# 3x3 conv tap offsets (dy, dx); order must match the weight packing below.
_TAPS = tuple((dy, dx) for dy in (-1, 0, 1) for dx in (-1, 0, 1))


def _round_up(x, m):
    return (x + m - 1) // m * m


def _pick_chunk(n, cp, hw, budget_bytes=4 << 20):
    """Images per grid step: batch several to amortize per-step overhead, but
    keep >= 2 grid steps (dual-TensorCore) and bound the im2col scratch."""
    per_img = 9 * cp * hw * 4          # bytes of the f32 im2col stack / image
    for c in (8, 4, 2):
        if n % c == 0 and n // c >= 2 and c * per_img <= budget_bytes:
            return c
    return 1


def _basic_block_kernel(x_ref, w_ref, b_ref, m_ref, out_ref, stack_ref, *, width):
    """Fused conv3x3 -> BN -> ReLU -> conv3x3 -> BN -> +identity -> ReLU.

    Block shapes (one grid step = `chunk` images, npix = chunk*H*W):
      x_ref     : (Cp, npix)      images, pixels lane-dense, channels padded
      w_ref     : (2, Cp, 9*Cp)   BN-folded conv1 / conv2 weight matrices
      b_ref     : (2, Cp, 1)      BN-folded per-channel biases
      m_ref     : (9, npix)       per-tap boundary masks (0/1)
      out_ref   : (Cp, npix)
      stack_ref : VMEM (9*Cp, npix)  im2col tap-stack scratch
    """
    cp = x_ref.shape[0]
    npix = x_ref.shape[1]

    def conv3x3(img, w_mat):
        # Build the 9-tap im2col stack: tap (dy, dx) = roll by the flattened
        # offset dy*W + dx, zero-masked at image/row boundaries.  Rolling the
        # whole concatenated-pixel block is correct because every position
        # whose tap falls outside its own image is masked to zero.
        for t, (dy, dx) in enumerate(_TAPS):
            s = dy * width + dx
            tap = img if s == 0 else pltpu.roll(img, shift=(-s) % npix, axis=1)
            if not (dy == 0 and dx == 0):
                tap = tap * m_ref[t:t + 1, :]
            stack_ref[t * cp:(t + 1) * cp, :] = tap   # 8-aligned sublane store
        # Single MXU contraction: (Cp, 9*Cp) x (9*Cp, npix) -> (Cp, npix).
        return jnp.dot(w_mat, stack_ref[...],
                       preferred_element_type=jnp.float32)

    x = x_ref[...]                                     # (Cp, npix)
    h1 = jnp.maximum(conv3x3(x, w_ref[0]) + b_ref[0], 0.0)
    h2 = conv3x3(h1, w_ref[1]) + b_ref[1]
    out_ref[...] = jnp.maximum(h2 + x, 0.0)            # residual add + ReLU


@jax.jit
def basic_block_forward(x_nchw, w1, g1, beta1, mean1, var1,
                        w2, g2, beta2, mean2, var2, eps=1e-5):
    """x_nchw: (N, C, H, W) f32.  w1/w2: (Cout, Cin, 3, 3) (PyTorch OIHW)."""
    N, C, H, W = x_nchw.shape
    HW = H * W
    Cmid, Cout = w1.shape[0], w2.shape[0]
    assert w1.shape[1] == C and w2.shape[1] == Cmid
    # downsample=None / stride=1: identity add needs matching channel counts.
    assert Cmid == C and Cout == C, \
        "BasicBlock with downsample=None requires inplanes == planes"

    Cp = _round_up(max(C, 8), 8)        # channels padded to sublane multiple
    pad_c = Cp - C

    # Fold eval-mode BatchNorm into conv weights and per-channel biases.
    s1 = g1 / jnp.sqrt(var1 + eps)
    s2 = g2 / jnp.sqrt(var2 + eps)

    def pack_w(w, s):
        # OIHW -> (Cout, ky, kx, Cin) -> (Cout, 9, Cin); tap order == _TAPS.
        wm = jnp.transpose(w.astype(jnp.float32) * s[:, None, None, None],
                           (0, 2, 3, 1)).reshape(C, 9, C)
        wm = jnp.pad(wm, ((0, pad_c), (0, 0), (0, pad_c)))
        return wm.reshape(Cp, 9 * Cp)

    w_all = jnp.stack([pack_w(w1, s1), pack_w(w2, s2)], axis=0)   # (2, Cp, 9*Cp)
    b_all = jnp.stack([jnp.pad(beta1 - mean1 * s1, (0, pad_c)),
                       jnp.pad(beta2 - mean2 * s2, (0, pad_c))],
                      axis=0).reshape(2, Cp, 1)                   # (2, Cp, 1)

    # NCHW -> channel-major lane-dense slab (Cp, N*HW) (layout plumbing only).
    x_p = jnp.pad(x_nchw.astype(jnp.float32),
                  ((0, 0), (0, pad_c), (0, 0), (0, 0)))
    x_flat = jnp.transpose(x_p.reshape(N, Cp, HW), (1, 0, 2)).reshape(Cp, N * HW)

    chunk = _pick_chunk(N, Cp, HW)
    npix = chunk * HW
    grid = (N // chunk,)

    # Per-tap validity masks over the flattened pixel index, tiled per chunk.
    ys, xs = np.divmod(np.arange(HW, dtype=np.int64), W)
    masks_np = np.stack(
        [((ys + dy >= 0) & (ys + dy < H) & (xs + dx >= 0) & (xs + dx < W))
         .astype(np.float32) for dy, dx in _TAPS], axis=0)        # (9, HW)
    masks = jnp.asarray(np.tile(masks_np, (1, chunk)))            # (9, npix)

    kernel = functools.partial(_basic_block_kernel, width=W)

    out_flat = pl.pallas_call(
        kernel,
        out_shape=jax.ShapeDtypeStruct((Cp, N * HW), jnp.float32),
        grid_spec=pltpu.PrefetchScalarGridSpec(
            num_scalar_prefetch=0,
            grid=grid,
            in_specs=[
                pl.BlockSpec((Cp, npix), lambda n: (0, n)),
                pl.BlockSpec((2, Cp, 9 * Cp), lambda n: (0, 0, 0)),
                pl.BlockSpec((2, Cp, 1), lambda n: (0, 0, 0)),
                pl.BlockSpec((9, npix), lambda n: (0, 0)),
            ],
            out_specs=pl.BlockSpec((Cp, npix), lambda n: (0, n)),
            scratch_shapes=[pltpu.VMEM((9 * Cp, npix), jnp.float32)],
        ),
        compiler_params=pltpu.CompilerParams(
            dimension_semantics=("parallel",)),
    )(x_flat, w_all, b_all, masks)

    # (Cp, N*HW) -> (N, C, H, W); drop the padded channels.
    out = jnp.transpose(out_flat.reshape(Cp, N, HW), (1, 0, 2))[:, :C, :]
    return out.reshape(N, C, H, W)


def _reference_forward(x, w1, g1, beta1, mean1, var1,
                       w2, g2, beta2, mean2, var2, eps=1e-5):
    """Plain-JAX reference of the PyTorch BasicBlock (eval-mode BN)."""
    def conv(h, w):
        return jax.lax.conv_general_dilated(
            h, w, window_strides=(1, 1), padding=((1, 1), (1, 1)),
            dimension_numbers=("NCHW", "OIHW", "NCHW"),
            precision=jax.lax.Precision.HIGHEST)

    def bn(h, g, b, m, v):
        inv = g / jnp.sqrt(v + eps)
        return h * inv[None, :, None, None] + (b - m * inv)[None, :, None, None]

    h = jax.nn.relu(bn(conv(x, w1), g1, beta1, mean1, var1))
    h = bn(conv(h, w2), g2, beta2, mean2, var2)
    return jax.nn.relu(h + x)


if __name__ == "__main__":
    # Small shapes consistent with the module: inplanes = planes = 4,
    # stride = 1, downsample = None  ->  x: (N=2, C=4, H=16, W=16).
    N, C, H, W = 2, 4, 16, 16
    planes = C

    key = jax.random.PRNGKey(0)
    keys = jax.random.split(key, 11)

    x = jax.random.normal(keys[0], (N, C, H, W), dtype=jnp.float32)

    # conv weights in PyTorch OIHW layout (Cout, Cin, 3, 3)
    w1 = 0.1 * jax.random.normal(keys[1], (planes, C, 3, 3), jnp.float32)
    w2 = 0.1 * jax.random.normal(keys[2], (planes, planes, 3, 3), jnp.float32)

    # eval-mode BatchNorm parameters / running statistics
    g1 = 1.0 + 0.1 * jax.random.normal(keys[3], (planes,), jnp.float32)
    beta1 = 0.1 * jax.random.normal(keys[4], (planes,), jnp.float32)
    mean1 = 0.1 * jax.random.normal(keys[5], (planes,), jnp.float32)
    var1 = 0.5 + jnp.abs(jax.random.normal(keys[6], (planes,), jnp.float32))

    g2 = 1.0 + 0.1 * jax.random.normal(keys[7], (planes,), jnp.float32)
    beta2 = 0.1 * jax.random.normal(keys[8], (planes,), jnp.float32)
    mean2 = 0.1 * jax.random.normal(keys[9], (planes,), jnp.float32)
    var2 = 0.5 + jnp.abs(jax.random.normal(keys[10], (planes,), jnp.float32))

    out = basic_block_forward(x, w1, g1, beta1, mean1, var1,
                              w2, g2, beta2, mean2, var2)
    out = jax.block_until_ready(out)

    assert out.shape == (N, planes, H, W), out.shape
    assert bool(jnp.all(out >= 0.0)), "ReLU output must be non-negative"

    # Correctness check against the plain-JAX reference of the same module.
    ref = _reference_forward(x, w1, g1, beta1, mean1, var1,
                             w2, g2, beta2, mean2, var2)
    max_err = float(jnp.max(jnp.abs(out - ref)))
    assert max_err < 5e-2, f"kernel/reference mismatch, max abs err={max_err}"

    print("KERNEL_OK")
</pallas_src>

<mosaic_0001>
module attributes {stable_mosaic.version = 11 : i64} {
  func.func @_basic_block_kernel(%arg0: i32, %arg1: memref<8x256xf32, #tpu.memory_space<vmem>>, %arg2: memref<2x8x72xf32, #tpu.memory_space<vmem>>, %arg3: memref<2x8x1xf32, #tpu.memory_space<vmem>>, %arg4: memref<9x256xf32, #tpu.memory_space<vmem>>, %arg5: memref<8x256xf32, #tpu.memory_space<vmem>>, %arg6: memref<72x256xf32, #tpu.memory_space<vmem>>) attributes {dimension_semantics = [#tpu.dimension_semantics<parallel>], iteration_bounds = array<i64: 2>, scalar_prefetch = 0 : i64, scratch_operands = 1 : i64, tpu.core_type = #tpu.core_type<tc>, window_params = [{transform_indices = @transform_0, window_bounds = array<i64: 8, 256>}, {pipeline_mode = #tpu.pipeline_mode<synchronous>, transform_indices = @transform_1, window_bounds = array<i64: 2, 8, 72>}, {pipeline_mode = #tpu.pipeline_mode<synchronous>, transform_indices = @transform_2, window_bounds = array<i64: 2, 8, 1>}, {pipeline_mode = #tpu.pipeline_mode<synchronous>, transform_indices = @transform_3, window_bounds = array<i64: 9, 256>}, {transform_indices = @transform_4, window_bounds = array<i64: 8, 256>}]} {
    %c0 = arith.constant 0 : index
    %c0_0 = arith.constant 0 : index
    %0 = vector.load %arg1[%c0, %c0_0] : memref<8x256xf32, #tpu.memory_space<vmem>>, vector<8x256xf32>
    %c0_1 = arith.constant 0 : index
    %c0_2 = arith.constant 0 : index
    %c0_3 = arith.constant 0 : index
    %1 = vector.load %arg2[%c0_1, %c0_2, %c0_3] : memref<2x8x72xf32, #tpu.memory_space<vmem>>, vector<1x8x72xf32>
    %2 = vector.shape_cast %1 : vector<1x8x72xf32> to vector<8x72xf32>
    %c17_i32 = arith.constant 17 : i32
    %3 = tpu.dynamic_rotate %0 by %c17_i32 dim 1 : vector<8x256xf32>, i32 -> vector<8x256xf32>
    %c0_4 = arith.constant 0 : index
    %c0_5 = arith.constant 0 : index
    %4 = vector.load %arg4[%c0_4, %c0_5] : memref<9x256xf32, #tpu.memory_space<vmem>>, vector<1x256xf32>
    %5 = vector.broadcast %4 : vector<1x256xf32> to vector<8x256xf32>
    %6 = arith.mulf %3, %5 : vector<8x256xf32>
    %c0_6 = arith.constant 0 : index
    %c0_7 = arith.constant 0 : index
    %7 = vector.load %arg6[%c0_6, %c0_7] : memref<72x256xf32, #tpu.memory_space<vmem>>, vector<8x256xf32>
    tpu.vector_store %arg6[%c0_6, %c0_7], %6 {strides = array<i32>} : memref<72x256xf32, #tpu.memory_space<vmem>>, vector<8x256xf32>,
    %c16_i32 = arith.constant 16 : i32
    %8 = tpu.dynamic_rotate %0 by %c16_i32 dim 1 : vector<8x256xf32>, i32 -> vector<8x256xf32>
    %c1 = arith.constant 1 : index
    %c0_8 = arith.constant 0 : index
    %9 = vector.load %arg4[%c1, %c0_8] : memref<9x256xf32, #tpu.memory_space<vmem>>, vector<1x256xf32>
    %10 = vector.broadcast %9 : vector<1x256xf32> to vector<8x256xf32>
    %11 = arith.mulf %8, %10 : vector<8x256xf32>
    %c8 = arith.constant 8 : index
    %c0_9 = arith.constant 0 : index
    %12 = vector.load %arg6[%c8, %c0_9] : memref<72x256xf32, #tpu.memory_space<vmem>>, vector<8x256xf32>
    tpu.vector_store %arg6[%c8, %c0_9], %11 {strides = array<i32>} : memref<72x256xf32, #tpu.memory_space<vmem>>, vector<8x256xf32>,
    %c15_i32 = arith.constant 15 : i32
    %13 = tpu.dynamic_rotate %0 by %c15_i32 dim 1 : vector<8x256xf32>, i32 -> vector<8x256xf32>
    %c2 = arith.constant 2 : index
    %c0_10 = arith.constant 0 : index
    %14 = vector.load %arg4[%c2, %c0_10] : memref<9x256xf32, #tpu.memory_space<vmem>>, vector<1x256xf32>
    %15 = vector.broadcast %14 : vector<1x256xf32> to vector<8x256xf32>
    %16 = arith.mulf %13, %15 : vector<8x256xf32>
    %c16 = arith.constant 16 : index
    %c0_11 = arith.constant 0 : index
    %17 = vector.load %arg6[%c16, %c0_11] : memref<72x256xf32, #tpu.memory_space<vmem>>, vector<8x256xf32>
    tpu.vector_store %arg6[%c16, %c0_11], %16 {strides = array<i32>} : memref<72x256xf32, #tpu.memory_space<vmem>>, vector<8x256xf32>,
    %c1_i32 = arith.constant 1 : i32
    %18 = tpu.dynamic_rotate %0 by %c1_i32 dim 1 : vector<8x256xf32>, i32 -> vector<8x256xf32>
    %c3 = arith.constant 3 : index
    %c0_12 = arith.constant 0 : index
    %19 = vector.load %arg4[%c3, %c0_12] : memref<9x256xf32, #tpu.memory_space<vmem>>, vector<1x256xf32>
    %20 = vector.broadcast %19 : vector<1x256xf32> to vector<8x256xf32>
    %21 = arith.mulf %18, %20 : vector<8x256xf32>
    %c24 = arith.constant 24 : index
    %c0_13 = arith.constant 0 : index
    %22 = vector.load %arg6[%c24, %c0_13] : memref<72x256xf32, #tpu.memory_space<vmem>>, vector<8x256xf32>
    tpu.vector_store %arg6[%c24, %c0_13], %21 {strides = array<i32>} : memref<72x256xf32, #tpu.memory_space<vmem>>, vector<8x256xf32>,
    %c32 = arith.constant 32 : index
    %c0_14 = arith.constant 0 : index
    %23 = vector.load %arg6[%c32, %c0_14] : memref<72x256xf32, #tpu.memory_space<vmem>>, vector<8x256xf32>
    tpu.vector_store %arg6[%c32, %c0_14], %0 {strides = array<i32>} : memref<72x256xf32, #tpu.memory_space<vmem>>, vector<8x256xf32>,
    %c255_i32 = arith.constant 255 : i32
    %24 = tpu.dynamic_rotate %0 by %c255_i32 dim 1 : vector<8x256xf32>, i32 -> vector<8x256xf32>
    %c5 = arith.constant 5 : index
    %c0_15 = arith.constant 0 : index
    %25 = vector.load %arg4[%c5, %c0_15] : memref<9x256xf32, #tpu.memory_space<vmem>>, vector<1x256xf32>
    %26 = vector.broadcast %25 : vector<1x256xf32> to vector<8x256xf32>
    %27 = arith.mulf %24, %26 : vector<8x256xf32>
    %c40 = arith.constant 40 : index
    %c0_16 = arith.constant 0 : index
    %28 = vector.load %arg6[%c40, %c0_16] : memref<72x256xf32, #tpu.memory_space<vmem>>, vector<8x256xf32>
    tpu.vector_store %arg6[%c40, %c0_16], %27 {strides = array<i32>} : memref<72x256xf32, #tpu.memory_space<vmem>>, vector<8x256xf32>,
    %c241_i32 = arith.constant 241 : i32
    %29 = tpu.dynamic_rotate %0 by %c241_i32 dim 1 : vector<8x256xf32>, i32 -> vector<8x256xf32>
    %c6 = arith.constant 6 : index
    %c0_17 = arith.constant 0 : index
    %30 = vector.load %arg4[%c6, %c0_17] : memref<9x256xf32, #tpu.memory_space<vmem>>, vector<1x256xf32>
    %31 = vector.broadcast %30 : vector<1x256xf32> to vector<8x256xf32>
    %32 = arith.mulf %29, %31 : vector<8x256xf32>
    %c48 = arith.constant 48 : index
    %c0_18 = arith.constant 0 : index
    %33 = vector.load %arg6[%c48, %c0_18] : memref<72x256xf32, #tpu.memory_space<vmem>>, vector<8x256xf32>
    tpu.vector_store %arg6[%c48, %c0_18], %32 {strides = array<i32>} : memref<72x256xf32, #tpu.memory_space<vmem>>, vector<8x256xf32>,
    %c240_i32 = arith.constant 240 : i32
    %34 = tpu.dynamic_rotate %0 by %c240_i32 dim 1 : vector<8x256xf32>, i32 -> vector<8x256xf32>
    %c7 = arith.constant 7 : index
    %c0_19 = arith.constant 0 : index
    %35 = vector.load %arg4[%c7, %c0_19] : memref<9x256xf32, #tpu.memory_space<vmem>>, vector<1x256xf32>
    %36 = vector.broadcast %35 : vector<1x256xf32> to vector<8x256xf32>
    %37 = arith.mulf %34, %36 : vector<8x256xf32>
    %c56 = arith.constant 56 : index
    %c0_20 = arith.constant 0 : index
    %38 = vector.load %arg6[%c56, %c0_20] : memref<72x256xf32, #tpu.memory_space<vmem>>, vector<8x256xf32>
    tpu.vector_store %arg6[%c56, %c0_20], %37 {strides = array<i32>} : memref<72x256xf32, #tpu.memory_space<vmem>>, vector<8x256xf32>,
    %c239_i32 = arith.constant 239 : i32
    %39 = tpu.dynamic_rotate %0 by %c239_i32 dim 1 : vector<8x256xf32>, i32 -> vector<8x256xf32>
    %c8_21 = arith.constant 8 : index
    %c0_22 = arith.constant 0 : index
    %40 = vector.load %arg4[%c8_21, %c0_22] : memref<9x256xf32, #tpu.memory_space<vmem>>, vector<1x256xf32>
    %41 = vector.broadcast %40 : vector<1x256xf32> to vector<8x256xf32>
    %42 = arith.mulf %39, %41 : vector<8x256xf32>
    %c64 = arith.constant 64 : index
    %c0_23 = arith.constant 0 : index
    %43 = vector.load %arg6[%c64, %c0_23] : memref<72x256xf32, #tpu.memory_space<vmem>>, vector<8x256xf32>
    tpu.vector_store %arg6[%c64, %c0_23], %42 {strides = array<i32>} : memref<72x256xf32, #tpu.memory_space<vmem>>, vector<8x256xf32>,
    %c0_24 = arith.constant 0 : index
    %c0_25 = arith.constant 0 : index
    %44 = vector.load %arg6[%c0_24, %c0_25] : memref<72x256xf32, #tpu.memory_space<vmem>>, vector<72x256xf32>
    %cst = arith.constant dense<0.000000e+00> : vector<8x256xf32>
    %45 = tpu.matmul %2, %44, %cst {dimension_numbers = #tpu.dot_dimension_numbers<[1], [0], [0], [1], [0, 0, 1, 1], [], []>} : vector<8x72xf32>, vector<72x256xf32>, vector<8x256xf32> -> vector<8x256xf32>
    %c0_26 = arith.constant 0 : index
    %c0_27 = arith.constant 0 : index
    %c0_28 = arith.constant 0 : index
    %46 = vector.load %arg3[%c0_26, %c0_27, %c0_28] : memref<2x8x1xf32, #tpu.memory_space<vmem>>, vector<1x8x1xf32>
    %47 = vector.shape_cast %46 : vector<1x8x1xf32> to vector<8x1xf32>
    %48 = vector.broadcast %47 : vector<8x1xf32> to vector<8x256xf32>
    %49 = arith.addf %45, %48 : vector<8x256xf32>
    %cst_29 = arith.constant 0.000000e+00 : f32
    %50 = vector.broadcast %cst_29 : f32 to vector<8x256xf32>
    %51 = arith.maximumf %49, %50 : vector<8x256xf32>
    %c1_30 = arith.constant 1 : index
    %c0_31 = arith.constant 0 : index
    %c0_32 = arith.constant 0 : index
    %52 = vector.load %arg2[%c1_30, %c0_31, %c0_32] : memref<2x8x72xf32, #tpu.memory_space<vmem>>, vector<1x8x72xf32>
    %53 = vector.shape_cast %52 : vector<1x8x72xf32> to vector<8x72xf32>
    %c17_i32_33 = arith.constant 17 : i32
    %54 = tpu.dynamic_rotate %51 by %c17_i32_33 dim 1 : vector<8x256xf32>, i32 -> vector<8x256xf32>
    %c0_34 = arith.constant 0 : index
    %c0_35 = arith.constant 0 : index
    %55 = vector.load %arg4[%c0_34, %c0_35] : memref<9x256xf32, #tpu.memory_space<vmem>>, vector<1x256xf32>
    %56 = vector.broadcast %55 : vector<1x256xf32> to vector<8x256xf32>
    %57 = arith.mulf %54, %56 : vector<8x256xf32>
    %c0_36 = arith.constant 0 : index
    %c0_37 = arith.constant 0 : index
    %58 = vector.load %arg6[%c0_36, %c0_37] : memref<72x256xf32, #tpu.memory_space<vmem>>, vector<8x256xf32>
    tpu.vector_store %arg6[%c0_36, %c0_37], %57 {strides = array<i32>} : memref<72x256xf32, #tpu.memory_space<vmem>>, vector<8x256xf32>,
    %c16_i32_38 = arith.constant 16 : i32
    %59 = tpu.dynamic_rotate %51 by %c16_i32_38 dim 1 : vector<8x256xf32>, i32 -> vector<8x256xf32>
    %c1_39 = arith.constant 1 : index
    %c0_40 = arith.constant 0 : index
    %60 = vector.load %arg4[%c1_39, %c0_40] : memref<9x256xf32, #tpu.memory_space<vmem>>, vector<1x256xf32>
    %61 = vector.broadcast %60 : vector<1x256xf32> to vector<8x256xf32>
    %62 = arith.mulf %59, %61 : vector<8x256xf32>
    %c8_41 = arith.constant 8 : index
    %c0_42 = arith.constant 0 : index
    %63 = vector.load %arg6[%c8_41, %c0_42] : memref<72x256xf32, #tpu.memory_space<vmem>>, vector<8x256xf32>
    tpu.vector_store %arg6[%c8_41, %c0_42], %62 {strides = array<i32>} : memref<72x256xf32, #tpu.memory_space<vmem>>, vector<8x256xf32>,
    %c15_i32_43 = arith.constant 15 : i32
    %64 = tpu.dynamic_rotate %51 by %c15_i32_43 dim 1 : vector<8x256xf32>, i32 -> vector<8x256xf32>
    %c2_44 = arith.constant 2 : index
    %c0_45 = arith.constant 0 : index
    %65 = vector.load %arg4[%c2_44, %c0_45] : memref<9x256xf32, #tpu.memory_space<vmem>>, vector<1x256xf32>
    %66 = vector.broadcast %65 : vector<1x256xf32> to vector<8x256xf32>
    %67 = arith.mulf %64, %66 : vector<8x256xf32>
    %c16_46 = arith.constant 16 : index
    %c0_47 = arith.constant 0 : index
    %68 = vector.load %arg6[%c16_46, %c0_47] : memref<72x256xf32, #tpu.memory_space<vmem>>, vector<8x256xf32>
    tpu.vector_store %arg6[%c16_46, %c0_47], %67 {strides = array<i32>} : memref<72x256xf32, #tpu.memory_space<vmem>>, vector<8x256xf32>,
    %c1_i32_48 = arith.constant 1 : i32
    %69 = tpu.dynamic_rotate %51 by %c1_i32_48 dim 1 : vector<8x256xf32>, i32 -> vector<8x256xf32>
    %c3_49 = arith.constant 3 : index
    %c0_50 = arith.constant 0 : index
    %70 = vector.load %arg4[%c3_49, %c0_50] : memref<9x256xf32, #tpu.memory_space<vmem>>, vector<1x256xf32>
    %71 = vector.broadcast %70 : vector<1x256xf32> to vector<8x256xf32>
    %72 = arith.mulf %69, %71 : vector<8x256xf32>
    %c24_51 = arith.constant 24 : index
    %c0_52 = arith.constant 0 : index
    %73 = vector.load %arg6[%c24_51, %c0_52] : memref<72x256xf32, #tpu.memory_space<vmem>>, vector<8x256xf32>
    tpu.vector_store %arg6[%c24_51, %c0_52], %72 {strides = array<i32>} : memref<72x256xf32, #tpu.memory_space<vmem>>, vector<8x256xf32>,
    %c32_53 = arith.constant 32 : index
    %c0_54 = arith.constant 0 : index
    %74 = vector.load %arg6[%c32_53, %c0_54] : memref<72x256xf32, #tpu.memory_space<vmem>>, vector<8x256xf32>
    tpu.vector_store %arg6[%c32_53, %c0_54], %51 {strides = array<i32>} : memref<72x256xf32, #tpu.memory_space<vmem>>, vector<8x256xf32>,
    %c255_i32_55 = arith.constant 255 : i32
    %75 = tpu.dynamic_rotate %51 by %c255_i32_55 dim 1 : vector<8x256xf32>, i32 -> vector<8x256xf32>
    %c5_56 = arith.constant 5 : index
    %c0_57 = arith.constant 0 : index
    %76 = vector.load %arg4[%c5_56, %c0_57] : memref<9x256xf32, #tpu.memory_space<vmem>>, vector<1x256xf32>
    %77 = vector.broadcast %76 : vector<1x256xf32> to vector<8x256xf32>
    %78 = arith.mulf %75, %77 : vector<8x256xf32>
    %c40_58 = arith.constant 40 : index
    %c0_59 = arith.constant 0 : index
    %79 = vector.load %arg6[%c40_58, %c0_59] : memref<72x256xf32, #tpu.memory_space<vmem>>, vector<8x256xf32>
    tpu.vector_store %arg6[%c40_58, %c0_59], %78 {strides = array<i32>} : memref<72x256xf32, #tpu.memory_space<vmem>>, vector<8x256xf32>,
    %c241_i32_60 = arith.constant 241 : i32
    %80 = tpu.dynamic_rotate %51 by %c241_i32_60 dim 1 : vector<8x256xf32>, i32 -> vector<8x256xf32>
    %c6_61 = arith.constant 6 : index
    %c0_62 = arith.constant 0 : index
    %81 = vector.load %arg4[%c6_61, %c0_62] : memref<9x256xf32, #tpu.memory_space<vmem>>, vector<1x256xf32>
    %82 = vector.broadcast %81 : vector<1x256xf32> to vector<8x256xf32>
    %83 = arith.mulf %80, %82 : vector<8x256xf32>
    %c48_63 = arith.constant 48 : index
    %c0_64 = arith.constant 0 : index
    %84 = vector.load %arg6[%c48_63, %c0_64] : memref<72x256xf32, #tpu.memory_space<vmem>>, vector<8x256xf32>
    tpu.vector_store %arg6[%c48_63, %c0_64], %83 {strides = array<i32>} : memref<72x256xf32, #tpu.memory_space<vmem>>, vector<8x256xf32>,
    %c240_i32_65 = arith.constant 240 : i32
    %85 = tpu.dynamic_rotate %51 by %c240_i32_65 dim 1 : vector<8x256xf32>, i32 -> vector<8x256xf32>
    %c7_66 = arith.constant 7 : index
    %c0_67 = arith.constant 0 : index
    %86 = vector.load %arg4[%c7_66, %c0_67] : memref<9x256xf32, #tpu.memory_space<vmem>>, vector<1x256xf32>
    %87 = vector.broadcast %86 : vector<1x256xf32> to vector<8x256xf32>
    %88 = arith.mulf %85, %87 : vector<8x256xf32>
    %c56_68 = arith.constant 56 : index
    %c0_69 = arith.constant 0 : index
    %89 = vector.load %arg6[%c56_68, %c0_69] : memref<72x256xf32, #tpu.memory_space<vmem>>, vector<8x256xf32>
    tpu.vector_store %arg6[%c56_68, %c0_69], %88 {strides = array<i32>} : memref<72x256xf32, #tpu.memory_space<vmem>>, vector<8x256xf32>,
    %c239_i32_70 = arith.constant 239 : i32
    %90 = tpu.dynamic_rotate %51 by %c239_i32_70 dim 1 : vector<8x256xf32>, i32 -> vector<8x256xf32>
    %c8_71 = arith.constant 8 : index
    %c0_72 = arith.constant 0 : index
    %91 = vector.load %arg4[%c8_71, %c0_72] : memref<9x256xf32, #tpu.memory_space<vmem>>, vector<1x256xf32>
    %92 = vector.broadcast %91 : vector<1x256xf32> to vector<8x256xf32>
    %93 = arith.mulf %90, %92 : vector<8x256xf32>
    %c64_73 = arith.constant 64 : index
    %c0_74 = arith.constant 0 : index
    %94 = vector.load %arg6[%c64_73, %c0_74] : memref<72x256xf32, #tpu.memory_space<vmem>>, vector<8x256xf32>
    tpu.vector_store %arg6[%c64_73, %c0_74], %93 {strides = array<i32>} : memref<72x256xf32, #tpu.memory_space<vmem>>, vector<8x256xf32>,
    %c0_75 = arith.constant 0 : index
    %c0_76 = arith.constant 0 : index
    %95 = vector.load %arg6[%c0_75, %c0_76] : memref<72x256xf32, #tpu.memory_space<vmem>>, vector<72x256xf32>
    %cst_77 = arith.constant dense<0.000000e+00> : vector<8x256xf32>
    %96 = tpu.matmul %53, %95, %cst_77 {dimension_numbers = #tpu.dot_dimension_numbers<[1], [0], [0], [1], [0, 0, 1, 1], [], []>} : vector<8x72xf32>, vector<72x256xf32>, vector<8x256xf32> -> vector<8x256xf32>
    %c1_78 = arith.constant 1 : index
    %c0_79 = arith.constant 0 : index
    %c0_80 = arith.constant 0 : index
    %97 = vector.load %arg3[%c1_78, %c0_79, %c0_80] : memref<2x8x1xf32, #tpu.memory_space<vmem>>, vector<1x8x1xf32>
    %98 = vector.shape_cast %97 : vector<1x8x1xf32> to vector<8x1xf32>
    %99 = vector.broadcast %98 : vector<8x1xf32> to vector<8x256xf32>
    %100 = arith.addf %96, %99 : vector<8x256xf32>
    %101 = arith.addf %100, %0 : vector<8x256xf32>
    %cst_81 = arith.constant 0.000000e+00 : f32
    %102 = vector.broadcast %cst_81 : f32 to vector<8x256xf32>
    %103 = arith.maximumf %101, %102 : vector<8x256xf32>
    %c0_82 = arith.constant 0 : index
    %c0_83 = arith.constant 0 : index
    %104 = vector.load %arg5[%c0_82, %c0_83] : memref<8x256xf32, #tpu.memory_space<vmem>>, vector<8x256xf32>
    tpu.vector_store %arg5[%c0_82, %c0_83], %103 {strides = array<i32>} : memref<8x256xf32, #tpu.memory_space<vmem>>, vector<8x256xf32>,
    return
  }
  func.func @transform_0(%arg0: i32) -> (i32, i32) {
    %c0_i32 = arith.constant 0 : i32
    %c0_i32_0 = arith.constant 0 : i32
    return %c0_i32, %arg0 : i32, i32
  }
  func.func @transform_1(%arg0: i32) -> (i32, i32, i32) {
    %c0_i32 = arith.constant 0 : i32
    %c0_i32_0 = arith.constant 0 : i32
    %c0_i32_1 = arith.constant 0 : i32
    %c0_i32_2 = arith.constant 0 : i32
    return %c0_i32, %c0_i32_0, %c0_i32_1 : i32, i32, i32
  }
  func.func @transform_2(%arg0: i32) -> (i32, i32, i32) {
    %c0_i32 = arith.constant 0 : i32
    %c0_i32_0 = arith.constant 0 : i32
    %c0_i32_1 = arith.constant 0 : i32
    %c0_i32_2 = arith.constant 0 : i32
    return %c0_i32, %c0_i32_0, %c0_i32_1 : i32, i32, i32
  }
  func.func @transform_3(%arg0: i32) -> (i32, i32) {
    %c0_i32 = arith.constant 0 : i32
    %c0_i32_0 = arith.constant 0 : i32
    %c0_i32_1 = arith.constant 0 : i32
    return %c0_i32, %c0_i32_0 : i32, i32
  }
  func.func @transform_4(%arg0: i32) -> (i32, i32) {
    %c0_i32 = arith.constant 0 : i32
    %c0_i32_0 = arith.constant 0 : i32
    return %c0_i32, %arg0 : i32, i32
  }
}

</mosaic_0001>

<llo_original>
// kernel: basic_block_forward.1
$region0: #{basic_block_forward.1}
  #allocation0 [shape = 'u32[]', space=smem, size = 0x4, offset = 0x4, fixed_abs, tag = 'smem constant byte address 0x4 - core index']
  #allocation1 [shape = 'u32[72,128]{1,0:T(1,128)}', space=vmem, size = 0x9000, scoped, tag = 'internal scratch']
  #allocation2 [shape = 'f32[72,256]{1,0:T(8,128)}', space=vmem, size = 0x12000, scoped, tag = 'scratch operand']
  %s0 = inlined_call_operand.vmem [shape: f32[8,512], index: 0, kind: input, shape index: {}]
  %s1 = inlined_call_operand.vmem [shape: f32[2,8,72], index: 1, kind: input, shape index: {}]
  %s2 = inlined_call_operand.vmem [shape: f32[2,8,1], index: 2, kind: input, shape index: {}]
  %s3 = inlined_call_operand.vmem [shape: f32[9,256], index: 3, kind: input, shape index: {}]
  %s4 = inlined_call_operand.vmem [shape: f32[8,512], index: 4, kind: output, shape index: {}]
  %s5 = sld [smem:[#allocation0]]
  $region49: #{basic_block_forward.1} parent=0
    _
  %s7 = ssub.s32 1, %s5
  %s8 = scalar_select 0, %s7, %s5
  loop: start=0, step=1, limit=4
  $region2: #{basic_block_forward.1} parent=0 // loop_pre_header
    _
  $region3: #{basic_block_forward.1} parent=0 // loop_header
    %s10 = sphi 0, %s14
    %p11 = scmp.ge.s32.totalorder %s10, 4
    %s20 = sphi 0, %s22
    %s23 = sphi 0, %s20
    %s24 = sphi 0, %s23
    %s40 = sphi 0, %s24
    %s44 = sphi 0, %s44
    %s46 = sphi 0, %s44
    %s47 = sphi 0, %s46
    %s61 = sphi 0, %s47
    %s65 = sphi 0, %s65
    %s67 = sphi 0, %s65
    %s68 = sphi 0, %s67
    %s82 = sphi 0, %s68
    %s86 = sphi 0, %s86
    %s88 = sphi 0, %s86
    %s89 = sphi 0, %s88
    %s103 = sphi 0, %s89
    %s109 = sphi 0, %s111
    %s112 = sphi 0, %s109
    %s113 = sphi 0, %s112
    %s129 = sphi 0, %s113
  $region4: #{basic_block_forward.1} parent=0 // loop_header_branch
    %13 = sbr.rel (%p11) target = $region8
  $region5: #{basic_block_forward.1} parent=0 // loop_body
    %s15 = ssub.s32 %s10, 1
    %s16 = ssub.s32 %s10, 2
    %s17 = sadd.s32 %s10, 1
    %s18 = ssub.s32 %s10, %s17
    %p19 = scmp.eq.s32.totalorder %s18, 0
    %s21 = sadd.s32 %s20, 1
    %s22 = scalar_select %p19, %s20, %s21
    %p25 = pneg %p19
    %p26 = scmp.eq.s32.totalorder %s10, 1
    %p27 = por %p25, %p26
    %p28 = scmp.ne.s32.totalorder %s20, %s23
    %p29 = scmp.eq.s32.totalorder %s10, 0
    %p30 = por %p28, %p29
    %p31 = scmp.ne.s32.totalorder %s20, %s23
    %p32 = scmp.eq.s32.totalorder %s15, 1
    %p33 = por %p31, %p32
    %p34 = scmp.ne.s32.totalorder %s23, %s24
    %p35 = scmp.eq.s32.totalorder %s15, 0
    %p36 = por %p34, %p35
    %p37 = scmp.ne.s32.totalorder %s23, %s24
    %p38 = scmp.eq.s32.totalorder %s16, 1
    %p39 = por %p37, %p38
    %p41 = scmp.ne.s32.totalorder %s24, %s40
    %p42 = scmp.eq.s32.totalorder %s16, 0
    %p43 = por %p41, %p42
    %s45 = sadd.s32 %s44, 1
    %p48 = scmp.eq.s32.totalorder %s10, 1
    %p49 = scmp.ne.s32.totalorder %s44, %s46
    %p50 = scmp.eq.s32.totalorder %s10, 0
    %p51 = por %p49, %p50
    %p52 = scmp.ne.s32.totalorder %s44, %s46
    %p53 = scmp.eq.s32.totalorder %s15, 1
    %p54 = por %p52, %p53
    %p55 = scmp.ne.s32.totalorder %s46, %s47
    %p56 = scmp.eq.s32.totalorder %s15, 0
    %p57 = por %p55, %p56
    %p58 = scmp.ne.s32.totalorder %s46, %s47
    %p59 = scmp.eq.s32.totalorder %s16, 1
    %p60 = por %p58, %p59
    %p62 = scmp.ne.s32.totalorder %s47, %s61
    %p63 = scmp.eq.s32.totalorder %s16, 0
    %p64 = por %p62, %p63
    %s66 = sadd.s32 %s65, 1
    %p69 = scmp.eq.s32.totalorder %s10, 1
    %p70 = scmp.ne.s32.totalorder %s65, %s67
    %p71 = scmp.eq.s32.totalorder %s10, 0
    %p72 = por %p70, %p71
    %p73 = scmp.ne.s32.totalorder %s65, %s67
    %p74 = scmp.eq.s32.totalorder %s15, 1
    %p75 = por %p73, %p74
    %p76 = scmp.ne.s32.totalorder %s67, %s68
    %p77 = scmp.eq.s32.totalorder %s15, 0
    %p78 = por %p76, %p77
    %p79 = scmp.ne.s32.totalorder %s67, %s68
    %p80 = scmp.eq.s32.totalorder %s16, 1
    %p81 = por %p79, %p80
    %p83 = scmp.ne.s32.totalorder %s68, %s82
    %p84 = scmp.eq.s32.totalorder %s16, 0
    %p85 = por %p83, %p84
    %s87 = sadd.s32 %s86, 1
    %p90 = scmp.eq.s32.totalorder %s10, 1
    %p91 = scmp.ne.s32.totalorder %s86, %s88
    %p92 = scmp.eq.s32.totalorder %s10, 0
    %p93 = por %p91, %p92
    %p94 = scmp.ne.s32.totalorder %s86, %s88
    %p95 = scmp.eq.s32.totalorder %s15, 1
    %p96 = por %p94, %p95
    %p97 = scmp.ne.s32.totalorder %s88, %s89
    %p98 = scmp.eq.s32.totalorder %s15, 0
    %p99 = por %p97, %p98
    %p100 = scmp.ne.s32.totalorder %s88, %s89
    %p101 = scmp.eq.s32.totalorder %s16, 1
    %p102 = por %p100, %p101
    %p104 = scmp.ne.s32.totalorder %s89, %s103
    %p105 = scmp.eq.s32.totalorder %s16, 0
    %p106 = por %p104, %p105
    %s107 = ssub.s32 %s10, %s17
    %p108 = scmp.eq.s32.totalorder %s107, 0
    %s110 = sadd.s32 %s109, 1
    %s111 = scalar_select %p108, %s109, %s110
    %p114 = pneg %p108
    %p115 = scmp.eq.s32.totalorder %s10, 1
    %p116 = por %p114, %p115
    %p117 = scmp.ne.s32.totalorder %s109, %s112
    %p118 = scmp.eq.s32.totalorder %s10, 0
    %p119 = por %p117, %p118
    %p120 = scmp.ne.s32.totalorder %s109, %s112
    %p121 = scmp.eq.s32.totalorder %s15, 1
    %p122 = por %p120, %p121
    %p123 = scmp.ne.s32.totalorder %s112, %s113
    %p124 = scmp.eq.s32.totalorder %s15, 0
    %p125 = por %p123, %p124
    %p126 = scmp.ne.s32.totalorder %s112, %s113
    %p127 = scmp.eq.s32.totalorder %s16, 1
    %p128 = por %p126, %p127
    %p130 = scmp.ne.s32.totalorder %s113, %s129
    %p131 = scmp.eq.s32.totalorder %s16, 0
    %p132 = por %p130, %p131
    %p133 = scmp.le.s32.totalorder 1, %s10
    %p134 = scmp.lt.s32.totalorder %s10, 3
    %p135 = pnand %p133, %p134
    %p136 = pneg %p135
    // Predicated region
    $region9: #{basic_block_forward.1} parent=5 // pred_check
      _
    $region10: #{basic_block_forward.1} parent=5 // pred_check_branch
      %138 = sbr.rel (%p135) target = $region12
    $region11: #{basic_block_forward.1} parent=5 // pred_region
      %s139 = ssub.s32 %s10, 1
      // Predicated region
      $region13: #{basic_block_forward.1} parent=11 // pred_check
        %p140 = pneg %p57
      $region14: #{basic_block_forward.1} parent=11 // pred_check_branch
        %142 = sbr.rel (%p140) target = $region16
      $region15: #{basic_block_forward.1} parent=11 // pred_region
        _
      $region16: #{basic_block_forward.1} parent=11 // pred_fallthru
        _
      // Predicated region
      $region17: #{basic_block_forward.1} parent=11 // pred_check
        %p143 = pneg %p78
      $region18: #{basic_block_forward.1} parent=11 // pred_check_branch
        %145 = sbr.rel (%p143) target = $region20
      $region19: #{basic_block_forward.1} parent=11 // pred_region
        _
      $region20: #{basic_block_forward.1} parent=11 // pred_fallthru
        _
      // Predicated region
      $region21: #{basic_block_forward.1} parent=11 // pred_check
        %p146 = pneg %p99
      $region22: #{basic_block_forward.1} parent=11 // pred_check_branch
        %148 = sbr.rel (%p146) target = $region24
      $region23: #{basic_block_forward.1} parent=11 // pred_region
        _
      $region24: #{basic_block_forward.1} parent=11 // pred_fallthru
        _
    $region12: #{basic_block_forward.1} parent=5 // pred_fallthru
      _
    %p149 = scmp.lt.s32.totalorder %s10, 2
    // Predicated region
    $region25: #{basic_block_forward.1} parent=5 // pred_check
      %p150 = pneg %p149
    $region26: #{basic_block_forward.1} parent=5 // pred_check_branch
      %152 = sbr.rel (%p150) target = $region28
    $region27: #{basic_block_forward.1} parent=5 // pred_region
      // Predicated region
      $region29: #{basic_block_forward.1} parent=27 // pred_check
        %p153 = pneg %p30
      $region30: #{basic_block_forward.1} parent=27 // pred_check_branch
        %155 = sbr.rel (%p153) target = $region32
      $region31: #{basic_block_forward.1} parent=27 // pred_region
        %s156 = smul.u32 2, %s10
        %p157 = scmp.lt.s32.totalorder %s156, 3
        %s158 = scalar_select %p157, %s156, 3
        %s159 = smul.addr %s158, 8
        %s160 = scalar_lea.vmem %s0, %s159
        %s161 = smul.u32 2, %s10
      $region32: #{basic_block_forward.1} parent=27 // pred_fallthru
        _
    $region28: #{basic_block_forward.1} parent=5 // pred_fallthru
      _
    %p162 = scmp.le.s32.totalorder 1, %s10
    %p163 = scmp.lt.s32.totalorder %s10, 3
    %p164 = pnand %p162, %p163
    %p165 = pneg %p164
    // Predicated region
    $region33: #{basic_block_forward.1} parent=5 // pred_check
      _
    $region34: #{basic_block_forward.1} parent=5 // pred_check_branch
      %167 = sbr.rel (%p164) target = $region36
    $region35: #{basic_block_forward.1} parent=5 // pred_region
      %s168 = ssub.s32 %s10, 1
      %s169 = smul.u32 2, %s15
      %p170 = scmp.lt.s32.totalorder %s169, 3
      %s171 = scalar_select %p170, %s169, 3
      %s172 = smul.addr %s171, 8
      %s173 = scalar_lea.vmem %s0, %s172
      %p174 = pneg %p36
      %p175 = pneg %p33
      %p176 = pneg %p57
      %p177 = pneg %p54
      %p178 = pneg %p78
      %p179 = pneg %p75
      %p180 = pneg %p99
      %p181 = pneg %p96
      %p182 = pneg %p125
      %p183 = pneg %p122
      %s184 = smul.u32 2, %s15
      %p185 = scmp.lt.s32.totalorder %s184, 3
      %s186 = scalar_select %p185, %s184, 3
      %s187 = smul.addr %s186, 8
      %s188 = scalar_lea.vmem %s4, %s187
      %s189 = smul.u32 2, %s15
      %p190 = scmp.lt.s32.totalorder %s189, 3
      %s191 = scalar_select %p190, %s189, 3
      %s192 = smul.addr %s191, 8
      %s193 = scalar_lea.vmem %s0, %s192
      %s194 = smul.u32 2, %s15
      %s195 = smul.u32 2, %s15
      %p196 = scmp.lt.s32.totalorder %s195, 3
      %s197 = scalar_select %p196, %s195, 3
      %s198 = smul.addr %s197, 8
      %s199 = scalar_lea.vmem %s4, %s198
      %s200 = smul.u32 2, %s15
      %v201 = vld [vmem:[%s193] sm:$0xff]
      %v202 = vld [vmem:[%s193 + $0x8] sm:$0xff]
      %v203 = vld [vmem:[%s1] sm:$0xff]
      %204 = vrot.lane.b32.xlu0 %v201, 17
      %v205 = vpop.permute.xlu0 %204
      %206 = vrot.lane.b32.xlu0 %v202, 17
      %v207 = vpop.permute.xlu0 %206
      %v208 = vlaneseq
      %v209 = vand.u32 %v208, 127
      %vm210 = vcmp.lt.s32.totalorder %v209, 17
      %v211 = vsel %vm210, %v205, %v207
      %v212 = vsel %vm210, %v207, %v205
      %v213 = vld [vmem:[%s3] ss:$8 sm:$0x3]
      %v215 = vperm.slane %v213, 0
      %v216 = vperm.slane %v213, 1
      %v219 = vmul.f32 %v212, %v215
      %v220 = vmul.f32 %v211, %v216
      %221 = vst [vmem:[#allocation2] sm:$0xff] %v219
      %222 = vst [vmem:[#allocation2 + $0x8] sm:$0xff] %v220
      %223 = vrot.lane.b32.xlu0 %v201, 16
      %v224 = vpop.permute.xlu0 %223
      %225 = vrot.lane.b32.xlu0 %v202, 16
      %v226 = vpop.permute.xlu0 %225
      %vm227 = vcmp.lt.s32.totalorder %v209, 16
      %v228 = vsel %vm227, %v224, %v226
      %v229 = vsel %vm227, %v226, %v224
      %s230 = scalar_lea.vmem %s3, 1
      %v231 = vld [vmem:[%s230] ss:$8 sm:$0x3]
      %v233 = vperm.slane %v231, 0
      %v234 = vperm.slane %v231, 1
      %v237 = vmul.f32 %v229, %v233
      %v238 = vmul.f32 %v228, %v234
      %239 = vst [vmem:[#allocation2 + $0x10] sm:$0xff] %v237
      %240 = vst [vmem:[#allocation2 + $0x18] sm:$0xff] %v238
      %241 = vrot.lane.b32.xlu0 %v201, 15
      %v242 = vpop.permute.xlu0 %241
      %243 = vrot.lane.b32.xlu0 %v202, 15
      %v244 = vpop.permute.xlu0 %243
      %vm245 = vcmp.lt.s32.totalorder %v209, 15
      %v246 = vsel %vm245, %v242, %v244
      %v247 = vsel %vm245, %v244, %v242
      %s248 = scalar_lea.vmem %s3, 2
      %v249 = vld [vmem:[%s248] ss:$8 sm:$0x3]
      %v251 = vperm.slane %v249, 0
      %v252 = vperm.slane %v249, 1
      %v255 = vmul.f32 %v247, %v251
      %v256 = vmul.f32 %v246, %v252
      %257 = vst [vmem:[#allocation2 + $0x20] sm:$0xff] %v255
      %258 = vst [vmem:[#allocation2 + $0x28] sm:$0xff] %v256
      %259 = vrot.lane.b32.xlu0 %v201, 1
      %v260 = vpop.permute.xlu0 %259
      %261 = vrot.lane.b32.xlu0 %v202, 1
      %v262 = vpop.permute.xlu0 %261
      %vm263 = vcmp.lt.s32.totalorder %v209, 1
      %v264 = vsel %vm263, %v260, %v262
      %v265 = vsel %vm263, %v262, %v260
      %s266 = scalar_lea.vmem %s3, 3
      %v267 = vld [vmem:[%s266] ss:$8 sm:$0x3]
      %v269 = vperm.slane %v267, 0
      %v270 = vperm.slane %v267, 1
      %v273 = vmul.f32 %v265, %v269
      %v274 = vmul.f32 %v264, %v270
      %275 = vst [vmem:[#allocation2 + $0x30] sm:$0xff] %v273
      %276 = vst [vmem:[#allocation2 + $0x38] sm:$0xff] %v274
      %277 = vst [vmem:[#allocation2 + $0x40] sm:$0xff] %v201
      %278 = vst [vmem:[#allocation2 + $0x48] sm:$0xff] %v202
      %279 = vrot.lane.b32.xlu0 %v201, 127
      %v280 = vpop.permute.xlu0 %279
      %281 = vrot.lane.b32.xlu0 %v202, 127
      %v282 = vpop.permute.xlu0 %281
      %vm283 = vcmp.lt.s32.totalorder %v209, 127
      %v284 = vsel %vm283, %v280, %v282
      %v285 = vsel %vm283, %v282, %v280
      %s286 = scalar_lea.vmem %s3, 5
      %v287 = vld [vmem:[%s286] ss:$8 sm:$0x3]
      %v289 = vperm.slane %v287, 0
      %v290 = vperm.slane %v287, 1
      %v293 = vmul.f32 %v284, %v289
      %v294 = vmul.f32 %v285, %v290
      %295 = vst [vmem:[#allocation2 + $0x50] sm:$0xff] %v293
      %296 = vst [vmem:[#allocation2 + $0x58] sm:$0xff] %v294
      %297 = vrot.lane.b32.xlu0 %v201, 113
      %v298 = vpop.permute.xlu0 %297
      %299 = vrot.lane.b32.xlu0 %v202, 113
      %v300 = vpop.permute.xlu0 %299
      %vm301 = vcmp.lt.s32.totalorder %v209, 113
      %v302 = vsel %vm301, %v298, %v300
      %v303 = vsel %vm301, %v300, %v298
      %s304 = scalar_lea.vmem %s3, 6
      %v305 = vld [vmem:[%s304] ss:$8 sm:$0x3]
      %v307 = vperm.slane %v305, 0
      %v308 = vperm.slane %v305, 1
      %v311 = vmul.f32 %v302, %v307
      %v312 = vmul.f32 %v303, %v308
      %313 = vst [vmem:[#allocation2 + $0x60] sm:$0xff] %v311
      %314 = vst [vmem:[#allocation2 + $0x68] sm:$0xff] %v312
      %315 = vrot.lane.b32.xlu0 %v201, 112
      %v316 = vpop.permute.xlu0 %315
      %317 = vrot.lane.b32.xlu0 %v202, 112
      %v318 = vpop.permute.xlu0 %317
      %vm319 = vcmp.lt.s32.totalorder %v209, 112
      %v320 = vsel %vm319, %v316, %v318
      %v321 = vsel %vm319, %v318, %v316
      %s322 = scalar_lea.vmem %s3, 7
      %v323 = vld [vmem:[%s322] ss:$8 sm:$0x3]
      %v325 = vperm.slane %v323, 0
      %v326 = vperm.slane %v323, 1
      %v329 = vmul.f32 %v320, %v325
      %v330 = vmul.f32 %v321, %v326
      %331 = vst [vmem:[#allocation2 + $0x70] sm:$0xff] %v329
      %332 = vst [vmem:[#allocation2 + $0x78] sm:$0xff] %v330
      %333 = vrot.lane.b32.xlu0 %v201, 111
      %v334 = vpop.permute.xlu0 %333
      %335 = vrot.lane.b32.xlu0 %v202, 111
      %v336 = vpop.permute.xlu0 %335
      %vm337 = vcmp.lt.s32.totalorder %v209, 111
      %v338 = vsel %vm337, %v334, %v336
      %v339 = vsel %vm337, %v336, %v334
      %s340 = scalar_lea.vmem %s3, 16
      %v341 = vld [vmem:[%s340] ss:$8 sm:$0x3]
      %v343 = vperm.slane %v341, 0
      %v344 = vperm.slane %v341, 1
      %v347 = vmul.f32 %v338, %v343
      %v348 = vmul.f32 %v339, %v344
      %349 = vst [vmem:[#allocation2 + $0x80] sm:$0xff] %v347
      %350 = vst [vmem:[#allocation2 + $0x88] sm:$0xff] %v348
      %v351 = vld [vmem:[#allocation2] sm:$0xff]
      %v352 = vld [vmem:[#allocation2 + $0x8] sm:$0xff]
      %v353 = vld [vmem:[#allocation2 + $0x10] sm:$0xff]
      %v354 = vld [vmem:[#allocation2 + $0x18] sm:$0xff]
      %v355 = vld [vmem:[#allocation2 + $0x20] sm:$0xff]
      %v356 = vld [vmem:[#allocation2 + $0x28] sm:$0xff]
      %v357 = vld [vmem:[#allocation2 + $0x30] sm:$0xff]
      %v358 = vld [vmem:[#allocation2 + $0x38] sm:$0xff]
      %v359 = vld [vmem:[#allocation2 + $0x40] sm:$0xff]
      %v360 = vld [vmem:[#allocation2 + $0x48] sm:$0xff]
      %v361 = vld [vmem:[#allocation2 + $0x50] sm:$0xff]
      %v362 = vld [vmem:[#allocation2 + $0x58] sm:$0xff]
      %v363 = vld [vmem:[#allocation2 + $0x60] sm:$0xff]
      %v364 = vld [vmem:[#allocation2 + $0x68] sm:$0xff]
      %v365 = vld [vmem:[#allocation2 + $0x70] sm:$0xff]
      %v366 = vld [vmem:[#allocation2 + $0x78] sm:$0xff]
      %v367 = vld [vmem:[#allocation2 + $0x80] sm:$0xff]
      %v368 = vld [vmem:[#allocation2 + $0x88] sm:$0xff]
      %v369 = vld [vmem:[%s2] sm:$0xff]
      %371 = vset.pattern.permute.xlu0 0
      %372 = vperm.xlu0 %371, %v369
      %v373 = vpop.permute.xlu0 %372
      %vm375 = vcmask 588800
      %v377 = vsel %vm375, %v203, 0
      %379 = vmatpush.msra.mxu0 0.0
      %380 = vmatpush.msra.mxu0 0.0
      %381 = vmatpush.msra.mxu0 0.0
      %382 = vmatpush.msra.mxu0 0.0
      %383 = vmatpush.msra.mxu0 0.0
      %384 = vmatpush.msra.mxu0 0.0
      %385 = vmatpush.msra.mxu0 0.0
      %386 = vmatpush.msra.mxu0 %v367
      %387 = vmatpush.msra.mxu0 %v365
      %388 = vmatpush.msra.mxu0 %v363
      %389 = vmatpush.msra.mxu0 %v361
      %390 = vmatpush.msra.mxu0 %v359
      %391 = vmatpush.msra.mxu0 %v357
      %392 = vmatpush.msra.mxu0 %v355
      %393 = vmatpush.msra.mxu0 %v353
      %394 = vmatpush.msra.mxu0 %v351
      %395 = vmatmul.f32.gmra.mxu0 %v377
      %v396 = vpop.f32.mrf.mxu0
      %v397 = vadd.f32 %v373, %v396
      %398 = vdwg.mxu0
      %399 = vmatpush.msra.mxu0 0.0
      %400 = vmatpush.msra.mxu0 0.0
      %401 = vmatpush.msra.mxu0 0.0
      %402 = vmatpush.msra.mxu0 0.0
      %403 = vmatpush.msra.mxu0 0.0
      %404 = vmatpush.msra.mxu0 0.0
      %405 = vmatpush.msra.mxu0 0.0
      %406 = vmatpush.msra.mxu0 %v368
      %407 = vmatpush.msra.mxu0 %v366
      %408 = vmatpush.msra.mxu0 %v364
      %409 = vmatpush.msra.mxu0 %v362
      %410 = vmatpush.msra.mxu0 %v360
      %411 = vmatpush.msra.mxu0 %v358
      %412 = vmatpush.msra.mxu0 %v356
      %413 = vmatpush.msra.mxu0 %v354
      %414 = vmatpush.msra.mxu0 %v352
      %415 = vmatmul.f32.gmra.mxu0 %v377
      %v416 = vpop.f32.mrf.mxu0
      %v417 = vadd.f32 %v373, %v416
      %418 = vdwg.mxu0
      %v419 = vmax.f32 %v397, 0.0
      %v420 = vmax.f32 %v417, 0.0
      %s421 = scalar_lea.vmem %s1, 8
      %v422 = vld [vmem:[%s421] sm:$0xff]
      %423 = vrot.lane.b32.xlu0 %v419, 17
      %v424 = vpop.permute.xlu0 %423
      %425 = vrot.lane.b32.xlu0 %v420, 17
      %v426 = vpop.permute.xlu0 %425
      %v427 = vsel %vm210, %v424, %v426
      %v428 = vsel %vm210, %v426, %v424
      %v429 = vld [vmem:[%s3] ss:$8 sm:$0x3]
      %v431 = vperm.slane %v429, 0
      %v432 = vperm.slane %v429, 1
      %v435 = vmul.f32 %v428, %v431
      %v436 = vmul.f32 %v427, %v432
      %437 = vst [vmem:[#allocation2] sm:$0xff] %v435
      %438 = vst [vmem:[#allocation2 + $0x8] sm:$0xff] %v436
      %439 = vrot.lane.b32.xlu0 %v419, 16
      %v440 = vpop.permute.xlu0 %439
      %441 = vrot.lane.b32.xlu0 %v420, 16
      %v442 = vpop.permute.xlu0 %441
      %v443 = vsel %vm227, %v440, %v442
      %v444 = vsel %vm227, %v442, %v440
      %v445 = vld [vmem:[%s230] ss:$8 sm:$0x3]
      %v447 = vperm.slane %v445, 0
      %v448 = vperm.slane %v445, 1
      %v451 = vmul.f32 %v444, %v447
      %v452 = vmul.f32 %v443, %v448
      %453 = vst [vmem:[#allocation2 + $0x10] sm:$0xff] %v451
      %454 = vst [vmem:[#allocation2 + $0x18] sm:$0xff] %v452
      %455 = vrot.lane.b32.xlu0 %v419, 15
      %v456 = vpop.permute.xlu0 %455
      %457 = vrot.lane.b32.xlu0 %v420, 15
      %v458 = vpop.permute.xlu0 %457
      %v459 = vsel %vm245, %v456, %v458
      %v460 = vsel %vm245, %v458, %v456
      %v461 = vld [vmem:[%s248] ss:$8 sm:$0x3]
      %v463 = vperm.slane %v461, 0
      %v464 = vperm.slane %v461, 1
      %v467 = vmul.f32 %v460, %v463
      %v468 = vmul.f32 %v459, %v464
      %469 = vst [vmem:[#allocation2 + $0x20] sm:$0xff] %v467
      %470 = vst [vmem:[#allocation2 + $0x28] sm:$0xff] %v468
      %471 = vrot.lane.b32.xlu0 %v419, 1
      %v472 = vpop.permute.xlu0 %471
      %473 = vrot.lane.b32.xlu0 %v420, 1
      %v474 = vpop.permute.xlu0 %473
      %v475 = vsel %vm263, %v472, %v474
      %v476 = vsel %vm263, %v474, %v472
      %v477 = vld [vmem:[%s266] ss:$8 sm:$0x3]
      %v479 = vperm.slane %v477, 0
      %v480 = vperm.slane %v477, 1
      %v483 = vmul.f32 %v476, %v479
      %v484 = vmul.f32 %v475, %v480
      %485 = vst [vmem:[#allocation2 + $0x30] sm:$0xff] %v483
      %486 = vst [vmem:[#allocation2 + $0x38] sm:$0xff] %v484
      %487 = vst [vmem:[#allocation2 + $0x40] sm:$0xff] %v419
      %488 = vst [vmem:[#allocation2 + $0x48] sm:$0xff] %v420
      %489 = vrot.lane.b32.xlu0 %v419, 127
      %v490 = vpop.permute.xlu0 %489
      %491 = vrot.lane.b32.xlu0 %v420, 127
      %v492 = vpop.permute.xlu0 %491
      %v493 = vsel %vm283, %v490, %v492
      %v494 = vsel %vm283, %v492, %v490
      %v495 = vld [vmem:[%s286] ss:$8 sm:$0x3]
      %v497 = vperm.slane %v495, 0
      %v498 = vperm.slane %v495, 1
      %v501 = vmul.f32 %v493, %v497
      %v502 = vmul.f32 %v494, %v498
      %503 = vst [vmem:[#allocation2 + $0x50] sm:$0xff] %v501
      %504 = vst [vmem:[#allocation2 + $0x58] sm:$0xff] %v502
      %505 = vrot.lane.b32.xlu0 %v419, 113
      %v506 = vpop.permute.xlu0 %505
      %507 = vrot.lane.b32.xlu0 %v420, 113
      %v508 = vpop.permute.xlu0 %507
      %v509 = vsel %vm301, %v506, %v508
      %v510 = vsel %vm301, %v508, %v506
      %v511 = vld [vmem:[%s304] ss:$8 sm:$0x3]
      %v513 = vperm.slane %v511, 0
      %v514 = vperm.slane %v511, 1
      %v517 = vmul.f32 %v509, %v513
      %v518 = vmul.f32 %v510, %v514
      %519 = vst [vmem:[#allocation2 + $0x60] sm:$0xff] %v517
      %520 = vst [vmem:[#allocation2 + $0x68] sm:$0xff] %v518
      %521 = vrot.lane.b32.xlu0 %v419, 112
      %v522 = vpop.permute.xlu0 %521
      %523 = vrot.lane.b32.xlu0 %v420, 112
      %v524 = vpop.permute.xlu0 %523
      %v525 = vsel %vm319, %v522, %v524
      %v526 = vsel %vm319, %v524, %v522
      %v527 = vld [vmem:[%s322] ss:$8 sm:$0x3]
      %v529 = vperm.slane %v527, 0
      %v530 = vperm.slane %v527, 1
      %v533 = vmul.f32 %v525, %v529
      %v534 = vmul.f32 %v526, %v530
      %535 = vst [vmem:[#allocation2 + $0x70] sm:$0xff] %v533
      %536 = vst [vmem:[#allocation2 + $0x78] sm:$0xff] %v534
      %537 = vrot.lane.b32.xlu0 %v419, 111
      %v538 = vpop.permute.xlu0 %537
      %539 = vrot.lane.b32.xlu0 %v420, 111
      %v540 = vpop.permute.xlu0 %539
      %v541 = vsel %vm337, %v538, %v540
      %v542 = vsel %vm337, %v540, %v538
      %v543 = vld [vmem:[%s340] ss:$8 sm:$0x3]
      %v545 = vperm.slane %v543, 0
      %v546 = vperm.slane %v543, 1
      %v549 = vmul.f32 %v541, %v545
      %v550 = vmul.f32 %v542, %v546
      %551 = vst [vmem:[#allocation2 + $0x80] sm:$0xff] %v549
      %552 = vst [vmem:[#allocation2 + $0x88] sm:$0xff] %v550
      %v553 = vld [vmem:[#allocation2] sm:$0xff]
      %v554 = vld [vmem:[#allocation2 + $0x8] sm:$0xff]
      %v555 = vld [vmem:[#allocation2 + $0x10] sm:$0xff]
      %v556 = vld [vmem:[#allocation2 + $0x18] sm:$0xff]
      %v557 = vld [vmem:[#allocation2 + $0x20] sm:$0xff]
      %v558 = vld [vmem:[#allocation2 + $0x28] sm:$0xff]
      %v559 = vld [vmem:[#allocation2 + $0x30] sm:$0xff]
      %v560 = vld [vmem:[#allocation2 + $0x38] sm:$0xff]
      %v561 = vld [vmem:[#allocation2 + $0x40] sm:$0xff]
      %v562 = vld [vmem:[#allocation2 + $0x48] sm:$0xff]
      %v563 = vld [vmem:[#allocation2 + $0x50] sm:$0xff]
      %v564 = vld [vmem:[#allocation2 + $0x58] sm:$0xff]
      %v565 = vld [vmem:[#allocation2 + $0x60] sm:$0xff]
      %v566 = vld [vmem:[#allocation2 + $0x68] sm:$0xff]
      %v567 = vld [vmem:[#allocation2 + $0x70] sm:$0xff]
      %v568 = vld [vmem:[#allocation2 + $0x78] sm:$0xff]
      %v569 = vld [vmem:[#allocation2 + $0x80] sm:$0xff]
      %v570 = vld [vmem:[#allocation2 + $0x88] sm:$0xff]
      %s571 = scalar_lea.vmem %s2, 8
      %v572 = vld [vmem:[%s571] sm:$0xff]
      %574 = vset.pattern.permute.xlu0 0
      %575 = vperm.xlu0 %574, %v572
      %v576 = vpop.permute.xlu0 %575
      %v579 = vsel %vm375, %v422, 0
      %581 = vmatpush.msra.mxu0 0.0
      %582 = vmatpush.msra.mxu0 0.0
      %583 = vmatpush.msra.mxu0 0.0
      %584 = vmatpush.msra.mxu0 0.0
      %585 = vmatpush.msra.mxu0 0.0
      %586 = vmatpush.msra.mxu0 0.0
      %587 = vmatpush.msra.mxu0 0.0
      %588 = vmatpush.msra.mxu0 %v569
      %589 = vmatpush.msra.mxu0 %v567
      %590 = vmatpush.msra.mxu0 %v565
      %591 = vmatpush.msra.mxu0 %v563
      %592 = vmatpush.msra.mxu0 %v561
      %593 = vmatpush.msra.mxu0 %v559
      %594 = vmatpush.msra.mxu0 %v557
      %595 = vmatpush.msra.mxu0 %v555
      %596 = vmatpush.msra.mxu0 %v553
      %597 = vmatmul.f32.gmra.mxu0 %v579
      %v598 = vpop.f32.mrf.mxu0
      %v599 = vadd.f32 %v576, %v598
      %600 = vdwg.mxu0
      %601 = vmatpush.msra.mxu0 0.0
      %602 = vmatpush.msra.mxu0 0.0
      %603 = vmatpush.msra.mxu0 0.0
      %604 = vmatpush.msra.mxu0 0.0
      %605 = vmatpush.msra.mxu0 0.0
      %606 = vmatpush.msra.mxu0 0.0
      %607 = vmatpush.msra.mxu0 0.0
      %608 = vmatpush.msra.mxu0 %v570
      %609 = vmatpush.msra.mxu0 %v568
      %610 = vmatpush.msra.mxu0 %v566
      %611 = vmatpush.msra.mxu0 %v564
      %612 = vmatpush.msra.mxu0 %v562
      %613 = vmatpush.msra.mxu0 %v560
      %614 = vmatpush.msra.mxu0 %v558
      %615 = vmatpush.msra.mxu0 %v556
      %616 = vmatpush.msra.mxu0 %v554
      %617 = vmatmul.f32.gmra.mxu0 %v579
      %v618 = vpop.f32.mrf.mxu0
      %v619 = vadd.f32 %v576, %v618
      %620 = vdwg.mxu0
      %v621 = vadd.f32 %v599, %v201
      %v622 = vadd.f32 %v619, %v202
      %v623 = vmax.f32 %v621, 0.0
      %v624 = vmax.f32 %v622, 0.0
      %625 = vst [vmem:[%s199] sm:$0xff] %v623
      %626 = vst [vmem:[%s199 + $0x8] sm:$0xff] %v624
      %s627 = smul.u32 2, %s15
      %p628 = scmp.lt.s32.totalorder %s627, 3
      %s629 = scalar_select %p628, %s627, 3
      %s630 = smul.addr %s629, 8
      %s631 = scalar_lea.vmem %s4, %s630
      // Predicated region
      $region37: #{basic_block_forward.1} parent=35 // pred_check
        %p632 = pneg %p122
      $region38: #{basic_block_forward.1} parent=35 // pred_check_branch
        %634 = sbr.rel (%p632) target = $region40
      $region39: #{basic_block_forward.1} parent=35 // pred_region
        %s635 = smul.u32 2, %s15
      $region40: #{basic_block_forward.1} parent=35 // pred_fallthru
        _
    $region36: #{basic_block_forward.1} parent=5 // pred_fallthru
      _
    %p636 = scmp.le.s32.totalorder 2, %s10
    // Predicated region
    $region41: #{basic_block_forward.1} parent=5 // pred_check
      %p637 = pneg %p636
    $region42: #{basic_block_forward.1} parent=5 // pred_check_branch
      %639 = sbr.rel (%p637) target = $region44
    $region43: #{basic_block_forward.1} parent=5 // pred_region
      %s640 = ssub.s32 %s10, 2
      // Predicated region
      $region45: #{basic_block_forward.1} parent=43 // pred_check
        %p641 = pneg %p128
      $region46: #{basic_block_forward.1} parent=43 // pred_check_branch
        %643 = sbr.rel (%p641) target = $region48
      $region47: #{basic_block_forward.1} parent=43 // pred_region
        %s644 = smul.u32 2, %s16
        %p645 = scmp.lt.s32.totalorder %s644, 3
        %s646 = scalar_select %p645, %s644, 3
        %s647 = smul.addr %s646, 8
        %s648 = scalar_lea.vmem %s4, %s647
      $region48: #{basic_block_forward.1} parent=43 // pred_fallthru
        _
    $region44: #{basic_block_forward.1} parent=5 // pred_fallthru
      _
  $region6: #{basic_block_forward.1} parent=0 // loop_footer
    %s14 = sadd.s32 1, %s10
  $region7: #{basic_block_forward.1} parent=0 // loop_footer_branch
    %9 = sbr.rel target = $region3
  $region8: #{basic_block_forward.1} parent=0 // loop_exit
    _

</llo_original>
